<compile_context>
chip_gen: v5e
topology: v5e:2x2
jax: 0.10.0
libtpu: 0.0.40
codegen_flags: <defaults>
</compile_context>

<pallas_src>
import functools
import math

import jax
import jax.numpy as jnp
from jax import lax
from jax.experimental import pallas as pl
from jax.experimental.pallas import tpu as pltpu

# Same masking convention as the production flash/splash attention kernels.
_MASK_VALUE = -0.7 * float(jnp.finfo(jnp.float32).max)


def _round_up(x, m):
    return (x + m - 1) // m * m


def _arcface_kernel(labels_ref, emb_ref, w_ref, invw_ref, out_ref,
                    emb_n_ref, m_ref, l_ref, *,
                    scale, num_classes, block_c):
    p = pl.program_id(1)      # 0: online max/sum reduction, 1: write probs
    k = pl.program_id(2)      # class-tile index

    # ---- per-batch-tile init: normalize embeddings once, reset running stats
    @pl.when(jnp.logical_and(p == 0, k == 0))
    def _():
        emb = emb_ref[...].astype(jnp.float32)
        inv = lax.rsqrt(jnp.maximum(
            jnp.sum(emb * emb, axis=1, keepdims=True), 1e-24))  # 1/max(||e||,1e-12)
        emb_n_ref[...] = (emb * inv).astype(emb_n_ref.dtype)
        m_ref[...] = jnp.full_like(m_ref, _MASK_VALUE)
        l_ref[...] = jnp.zeros_like(l_ref)

    # ---- logits tile (tm, tn), recomputed in both passes --------------------
    # [tm,E] x [tn,E] contracted on E -> MXU with f32 accumulation; weight row
    # norms folded in afterwards as a cheap column scale.
    cosine = lax.dot_general(
        emb_n_ref[...], w_ref[...],
        dimension_numbers=(((1,), (1,)), ((), ())),
        preferred_element_type=jnp.float32)
    cosine = cosine * invw_ref[...]                      # (1, tn) broadcast

    col = lax.broadcasted_iota(jnp.int32, cosine.shape, 1) + k * block_c
    one_hot = col == labels_ref[...]                     # (tm, 1) broadcast
    valid = col < num_classes                            # mask padded columns

    # Margin epilogue reduced to a per-row correction: target column gets the
    # clipped cosine, everything else the raw cosine (== reference semantics).
    tgt = jnp.sum(jnp.where(one_hot, cosine, 0.0), axis=1, keepdims=True)
    tgt_clip = jnp.clip(tgt, -1.0 + 1e-07, 1.0 - 1e-07)
    logits = scale * (cosine + jnp.where(one_hot, tgt_clip - tgt, 0.0))
    logits = jnp.where(valid, logits, _MASK_VALUE)

    # ---- pass 0: online softmax statistics ----------------------------------
    @pl.when(p == 0)
    def _():
        m_prev = m_ref[...]
        m_new = jnp.maximum(m_prev, jnp.max(logits, axis=1, keepdims=True))
        l_ref[...] = (jnp.exp(m_prev - m_new) * l_ref[...]
                      + jnp.sum(jnp.exp(logits - m_new), axis=1, keepdims=True))
        m_ref[...] = m_new

    # ---- pass 1: write normalized probabilities -----------------------------
    @pl.when(p == 1)
    def _():
        l = l_ref[...]
        r = pl.reciprocal(l, approx=True)    # EUP slot
        r = r * (2.0 - l * r)                # one Newton step (per-row, cheap)
        out_ref[...] = jnp.exp(logits - m_ref[...]) * r


def arcface_forward(embeddings, labels, weight, margin=0.5, scale=64.0, *,
                    block_b=128, block_c=512, mxu_dtype=jnp.float32):
    """Pallas TPU implementation of ArcFaceLoss.forward (returns [B, C] probs)."""
    # `margin` cancels out of the reference formula (see kernel header note);
    # kept only for signature parity with the PyTorch module.
    del margin

    B, E = embeddings.shape
    C, E2 = weight.shape
    assert E == E2

    emb = embeddings.astype(jnp.float32)
    w = weight.astype(jnp.float32)

    # Per-class inverse L2 norm (== F.normalize(weight, dim=1)), folded into a
    # column scale inside the kernel so the raw weight streams straight to the
    # MXU (and can be streamed in bf16).
    inv_w_norm = lax.rsqrt(jnp.maximum(jnp.sum(w * w, axis=1), 1e-24))
    inv_w_norm = inv_w_norm.reshape(1, C)

    # TPU-friendly tile sizes: sublane-multiple batch tile, lane-dense
    # (multiple of 128) class tile, 128-multiple contraction dim.
    tm = min(block_b, _round_up(B, 8))
    tn = min(block_c, _round_up(C, 128))
    b_pad = _round_up(B, tm)
    c_pad = _round_up(C, tn)
    e_pad = _round_up(E, 128)

    emb_p = jnp.pad(emb, ((0, b_pad - B), (0, e_pad - E)))
    w_p = jnp.pad(w, ((0, c_pad - C), (0, e_pad - E))).astype(mxu_dtype)
    invw_p = jnp.pad(inv_w_norm, ((0, 0), (0, c_pad - C)))
    labels_p = jnp.pad(labels.astype(jnp.int32), (0, b_pad - B)).reshape(b_pad, 1)

    n_b = b_pad // tm
    n_c = c_pad // tn

    kernel = functools.partial(_arcface_kernel, scale=float(scale),
                               num_classes=C, block_c=tn)

    out = pl.pallas_call(
        kernel,
        out_shape=jax.ShapeDtypeStruct((b_pad, c_pad), jnp.float32),
        grid=(n_b, 2, n_c),              # (batch tiles, pass, class tiles)
        in_specs=[
            pl.BlockSpec((tm, 1), lambda i, p, k: (i, 0)),        # labels
            pl.BlockSpec((tm, e_pad), lambda i, p, k: (i, 0)),    # embeddings
            pl.BlockSpec((tn, e_pad), lambda i, p, k: (k, 0)),    # weight
            pl.BlockSpec((1, tn), lambda i, p, k: (0, k)),        # 1/||w_c||
        ],
        # Output tile (i, k); during pass 0 it parks on (i, 0) so no stale
        # write-back traffic happens before pass 1 fills each tile.
        out_specs=pl.BlockSpec((tm, tn), lambda i, p, k: (i, p * k)),
        scratch_shapes=[
            pltpu.VMEM((tm, e_pad), mxu_dtype),   # normalized embedding tile
            pltpu.VMEM((tm, 1), jnp.float32),     # running row max
            pltpu.VMEM((tm, 1), jnp.float32),     # running row sum
        ],
        compiler_params=pltpu.CompilerParams(
            dimension_semantics=("parallel", "arbitrary", "arbitrary"),
            vmem_limit_bytes=32 * 1024 * 1024),
    )(labels_p, emb_p, w_p, invw_p)

    return out[:B, :C]


def arcface_reference(embeddings, labels, weight, margin=0.5, scale=64.0):
    """Pure-JAX transliteration of the PyTorch forward (for checking)."""
    emb_n = embeddings / jnp.maximum(
        jnp.linalg.norm(embeddings, axis=1, keepdims=True), 1e-12)
    w_n = weight / jnp.maximum(
        jnp.linalg.norm(weight, axis=1, keepdims=True), 1e-12)
    cosine = emb_n @ w_n.T
    theta = jnp.arccos(jnp.clip(cosine, -1 + 1e-07, 1 - 1e-07))
    one_hot = jax.nn.one_hot(labels, weight.shape[0], dtype=jnp.float32)
    target_logits = jnp.cos(theta + margin * (1.0 - one_hot))
    logits = scale * jnp.where(one_hot.astype(bool), target_logits, cosine)
    return jax.nn.softmax(logits, axis=1)


if __name__ == "__main__":
    key = jax.random.PRNGKey(0)
    margin, scale = 0.5, 64.0

    # Config 1: module-like tiny shapes (embedding_size=32, num_classes=16).
    # Config 2: small shapes that still exercise batch tiling, class tiling,
    #           class/batch padding and the two-pass online softmax
    #           (grid = (3 batch tiles, 2 passes, 2 class tiles)).
    configs = [
        dict(B=8, E=32, C=16, block_b=128, block_c=512),
        dict(B=24, E=32, C=200, block_b=8, block_c=128),
    ]

    for cfg in configs:
        B, E, C = cfg["B"], cfg["E"], cfg["C"]
        key, k_emb, k_lab, k_w = jax.random.split(key, 4)

        embeddings = jax.random.normal(k_emb, (B, E), dtype=jnp.float32)
        labels = jax.random.randint(k_lab, (B,), 0, C, dtype=jnp.int32)
        # xavier_uniform_ init for weight [num_classes, embedding_size]
        bound = math.sqrt(6.0 / (E + C))
        weight = jax.random.uniform(k_w, (C, E), dtype=jnp.float32,
                                    minval=-bound, maxval=bound)

        probs = arcface_forward(embeddings, labels, weight, margin, scale,
                                block_b=cfg["block_b"], block_c=cfg["block_c"])
        probs = jax.block_until_ready(probs)

        ref = arcface_reference(embeddings, labels, weight, margin, scale)
        assert probs.shape == (B, C)
        err = float(jnp.max(jnp.abs(probs - ref)))
        assert jnp.allclose(probs, ref, atol=2e-3, rtol=2e-3), (
            f"config {cfg}: max abs diff {err}")
        assert jnp.allclose(jnp.sum(probs, axis=1), 1.0, atol=2e-3), (
            f"config {cfg}: rows do not sum to 1")

    print("KERNEL_OK")
</pallas_src>

<mosaic_0001>
module attributes {stable_mosaic.version = 11 : i64} {
  func.func @_arcface_kernel(%arg0: i32, %arg1: i32, %arg2: i32, %arg3: memref<8x1xi32, #tpu.memory_space<vmem>>, %arg4: memref<8x128xf32, #tpu.memory_space<vmem>>, %arg5: memref<128x128xf32, #tpu.memory_space<vmem>>, %arg6: memref<1x128xf32, #tpu.memory_space<vmem>>, %arg7: memref<8x128xf32, #tpu.memory_space<vmem>>, %arg8: memref<8x128xf32, #tpu.memory_space<vmem>>, %arg9: memref<8x1xf32, #tpu.memory_space<vmem>>, %arg10: memref<8x1xf32, #tpu.memory_space<vmem>>) attributes {dimension_semantics = [#tpu.dimension_semantics<parallel>, #tpu.dimension_semantics<arbitrary>, #tpu.dimension_semantics<arbitrary>], iteration_bounds = array<i64: 1, 2, 1>, scalar_prefetch = 0 : i64, scratch_operands = 3 : i64, tpu.core_type = #tpu.core_type<tc>, window_params = [{transform_indices = @transform_0, window_bounds = array<i64: 8, 1>}, {transform_indices = @transform_1, window_bounds = array<i64: 8, 128>}, {transform_indices = @transform_2, window_bounds = array<i64: 128, 128>}, {transform_indices = @transform_3, window_bounds = array<i64: 1, 128>}, {transform_indices = @transform_4, window_bounds = array<i64: 8, 128>}]} {
    %c0_i32 = arith.constant 0 : i32
    %0 = arith.cmpi eq, %arg1, %c0_i32 : i32
    %c0_i32_0 = arith.constant 0 : i32
    %1 = arith.cmpi eq, %arg2, %c0_i32_0 : i32
    %2 = arith.andi %0, %1 : i1
    %3 = arith.extui %2 : i1 to i32
    %c0_i32_1 = arith.constant 0 : i32
    %4 = arith.cmpi ne, %3, %c0_i32_1 : i32
    scf.if %4 {
      %c0_19 = arith.constant 0 : index
      %c0_20 = arith.constant 0 : index
      %44 = vector.load %arg4[%c0_19, %c0_20] : memref<8x128xf32, #tpu.memory_space<vmem>>, vector<8x128xf32>
      %45 = arith.mulf %44, %44 : vector<8x128xf32>
      %cst_21 = arith.constant dense<0.000000e+00> : vector<8xf32>
      %46 = vector.multi_reduction <add>, %45, %cst_21 [1] : vector<8x128xf32> to vector<8xf32>
      %47 = vector.shape_cast %46 : vector<8xf32> to vector<8x1xf32>
      %cst_22 = arith.constant 1.000000e-24 : f32
      %48 = vector.broadcast %cst_22 : f32 to vector<8x1xf32>
      %49 = arith.maximumf %47, %48 : vector<8x1xf32>
      %50 = math.rsqrt %49 : vector<8x1xf32>
      %51 = vector.broadcast %50 : vector<8x1xf32> to vector<8x128xf32>
      %52 = arith.mulf %44, %51 : vector<8x128xf32>
      %c0_23 = arith.constant 0 : index
      %c0_24 = arith.constant 0 : index
      %53 = vector.load %arg8[%c0_23, %c0_24] : memref<8x128xf32, #tpu.memory_space<vmem>>, vector<8x128xf32>
      tpu.vector_store %arg8[%c0_23, %c0_24], %52 {strides = array<i32>} : memref<8x128xf32, #tpu.memory_space<vmem>>, vector<8x128xf32>,
      %cst_25 = arith.constant -2.38197633E+38 : f32
      %54 = vector.broadcast %cst_25 : f32 to vector<8x1xf32>
      %c0_26 = arith.constant 0 : index
      %c0_27 = arith.constant 0 : index
      %55 = vector.load %arg9[%c0_26, %c0_27] : memref<8x1xf32, #tpu.memory_space<vmem>>, vector<8x1xf32>
      tpu.vector_store %arg9[%c0_26, %c0_27], %54 {strides = array<i32>} : memref<8x1xf32, #tpu.memory_space<vmem>>, vector<8x1xf32>,
      %cst_28 = arith.constant 0.000000e+00 : f32
      %56 = vector.broadcast %cst_28 : f32 to vector<8x1xf32>
      %c0_29 = arith.constant 0 : index
      %c0_30 = arith.constant 0 : index
      %57 = vector.load %arg10[%c0_29, %c0_30] : memref<8x1xf32, #tpu.memory_space<vmem>>, vector<8x1xf32>
      tpu.vector_store %arg10[%c0_29, %c0_30], %56 {strides = array<i32>} : memref<8x1xf32, #tpu.memory_space<vmem>>, vector<8x1xf32>,
    } else {
    }
    %c0 = arith.constant 0 : index
    %c0_2 = arith.constant 0 : index
    %5 = vector.load %arg8[%c0, %c0_2] : memref<8x128xf32, #tpu.memory_space<vmem>>, vector<8x128xf32>
    %c0_3 = arith.constant 0 : index
    %c0_4 = arith.constant 0 : index
    %6 = vector.load %arg5[%c0_3, %c0_4] : memref<128x128xf32, #tpu.memory_space<vmem>>, vector<128x128xf32>
    %cst = arith.constant dense<0.000000e+00> : vector<8x128xf32>
    %7 = tpu.matmul %5, %6, %cst {dimension_numbers = #tpu.dot_dimension_numbers<[1], [1], [0], [0], [0, 0, 1, 0], [], []>} : vector<8x128xf32>, vector<128x128xf32>, vector<8x128xf32> -> vector<8x128xf32>
    %c0_5 = arith.constant 0 : index
    %c0_6 = arith.constant 0 : index
    %8 = vector.load %arg6[%c0_5, %c0_6] : memref<1x128xf32, #tpu.memory_space<vmem>>, vector<1x128xf32>
    %9 = vector.broadcast %8 : vector<1x128xf32> to vector<8x128xf32>
    %10 = arith.mulf %7, %9 : vector<8x128xf32>
    %11 = tpu.iota {dimensions = array<i32: 1>} : vector<8x128xi32>
    %c128_i32 = arith.constant 128 : i32
    %12 = arith.muli %arg2, %c128_i32 : i32
    %13 = vector.broadcast %12 : i32 to vector<8x128xi32>
    %14 = arith.addi %11, %13 : vector<8x128xi32>
    %c0_7 = arith.constant 0 : index
    %c0_8 = arith.constant 0 : index
    %15 = vector.load %arg3[%c0_7, %c0_8] : memref<8x1xi32, #tpu.memory_space<vmem>>, vector<8x1xi32>
    %16 = vector.broadcast %15 : vector<8x1xi32> to vector<8x128xi32>
    %17 = arith.cmpi eq, %14, %16 : vector<8x128xi32>
    %c16_i32 = arith.constant 16 : i32
    %18 = vector.broadcast %c16_i32 : i32 to vector<8x128xi32>
    %19 = arith.cmpi slt, %14, %18 : vector<8x128xi32>
    %cst_9 = arith.constant 0.000000e+00 : f32
    %20 = vector.broadcast %cst_9 : f32 to vector<8x128xf32>
    %21 = arith.select %17, %10, %20 : vector<8x128xi1>, vector<8x128xf32>
    %cst_10 = arith.constant dense<0.000000e+00> : vector<8xf32>
    %22 = vector.multi_reduction <add>, %21, %cst_10 [1] : vector<8x128xf32> to vector<8xf32>
    %23 = vector.shape_cast %22 : vector<8xf32> to vector<8x1xf32>
    %cst_11 = arith.constant -0.99999988 : f32
    %cst_12 = arith.constant 0.99999988 : f32
    %24 = vector.broadcast %cst_11 : f32 to vector<8x1xf32>
    %25 = arith.maximumf %24, %23 : vector<8x1xf32>
    %26 = vector.broadcast %cst_12 : f32 to vector<8x1xf32>
    %27 = arith.minimumf %26, %25 : vector<8x1xf32>
    %28 = arith.subf %27, %23 : vector<8x1xf32>
    %cst_13 = arith.constant 0.000000e+00 : f32
    %29 = vector.shape_cast %28 : vector<8x1xf32> to vector<8x1xf32>
    %30 = vector.broadcast %29 : vector<8x1xf32> to vector<8x128xf32>
    %31 = vector.broadcast %cst_13 : f32 to vector<8x128xf32>
    %32 = arith.select %17, %30, %31 : vector<8x128xi1>, vector<8x128xf32>
    %33 = arith.addf %10, %32 : vector<8x128xf32>
    %cst_14 = arith.constant 6.400000e+01 : f32
    %34 = vector.broadcast %cst_14 : f32 to vector<8x128xf32>
    %35 = arith.mulf %34, %33 : vector<8x128xf32>
    %cst_15 = arith.constant -2.38197633E+38 : f32
    %36 = vector.broadcast %cst_15 : f32 to vector<8x128xf32>
    %37 = arith.select %19, %35, %36 : vector<8x128xi1>, vector<8x128xf32>
    %c0_i32_16 = arith.constant 0 : i32
    %38 = arith.cmpi eq, %arg1, %c0_i32_16 : i32
    %39 = arith.extui %38 : i1 to i32
    %c0_i32_17 = arith.constant 0 : i32
    %40 = arith.cmpi ne, %39, %c0_i32_17 : i32
    scf.if %40 {
      %c0_19 = arith.constant 0 : index
      %c0_20 = arith.constant 0 : index
      %44 = vector.load %arg9[%c0_19, %c0_20] : memref<8x1xf32, #tpu.memory_space<vmem>>, vector<8x1xf32>
      %cst_21 = arith.constant dense<0xFF800000> : vector<8xf32>
      %45 = vector.multi_reduction <maximumf>, %37, %cst_21 [1] : vector<8x128xf32> to vector<8xf32>
      %46 = vector.shape_cast %45 : vector<8xf32> to vector<8x1xf32>
      %47 = arith.maximumf %44, %46 : vector<8x1xf32>
      %48 = arith.subf %44, %47 : vector<8x1xf32>
      %49 = math.exp %48 : vector<8x1xf32>
      %c0_22 = arith.constant 0 : index
      %c0_23 = arith.constant 0 : index
      %50 = vector.load %arg10[%c0_22, %c0_23] : memref<8x1xf32, #tpu.memory_space<vmem>>, vector<8x1xf32>
      %51 = arith.mulf %49, %50 : vector<8x1xf32>
      %52 = vector.broadcast %47 : vector<8x1xf32> to vector<8x128xf32>
      %53 = arith.subf %37, %52 : vector<8x128xf32>
      %54 = math.exp %53 : vector<8x128xf32>
      %cst_24 = arith.constant dense<0.000000e+00> : vector<8xf32>
      %55 = vector.multi_reduction <add>, %54, %cst_24 [1] : vector<8x128xf32> to vector<8xf32>
      %56 = vector.shape_cast %55 : vector<8xf32> to vector<8x1xf32>
      %57 = arith.addf %51, %56 : vector<8x1xf32>
      %c0_25 = arith.constant 0 : index
      %c0_26 = arith.constant 0 : index
      %58 = vector.load %arg10[%c0_25, %c0_26] : memref<8x1xf32, #tpu.memory_space<vmem>>, vector<8x1xf32>
      tpu.vector_store %arg10[%c0_25, %c0_26], %57 {strides = array<i32>} : memref<8x1xf32, #tpu.memory_space<vmem>>, vector<8x1xf32>,
      %c0_27 = arith.constant 0 : index
      %c0_28 = arith.constant 0 : index
      %59 = vector.load %arg9[%c0_27, %c0_28] : memref<8x1xf32, #tpu.memory_space<vmem>>, vector<8x1xf32>
      tpu.vector_store %arg9[%c0_27, %c0_28], %47 {strides = array<i32>} : memref<8x1xf32, #tpu.memory_space<vmem>>, vector<8x1xf32>,
    } else {
    }
    %c1_i32 = arith.constant 1 : i32
    %41 = arith.cmpi eq, %arg1, %c1_i32 : i32
    %42 = arith.extui %41 : i1 to i32
    %c0_i32_18 = arith.constant 0 : i32
    %43 = arith.cmpi ne, %42, %c0_i32_18 : i32
    scf.if %43 {
      %c0_19 = arith.constant 0 : index
      %c0_20 = arith.constant 0 : index
      %44 = vector.load %arg10[%c0_19, %c0_20] : memref<8x1xf32, #tpu.memory_space<vmem>>, vector<8x1xf32>
      %45 = tpu.reciprocal %44 {approx = true} : vector<8x1xf32> -> vector<8x1xf32>
      %46 = arith.mulf %44, %45 : vector<8x1xf32>
      %cst_21 = arith.constant 2.000000e+00 : f32
      %47 = vector.broadcast %cst_21 : f32 to vector<8x1xf32>
      %48 = arith.subf %47, %46 : vector<8x1xf32>
      %49 = arith.mulf %45, %48 : vector<8x1xf32>
      %c0_22 = arith.constant 0 : index
      %c0_23 = arith.constant 0 : index
      %50 = vector.load %arg9[%c0_22, %c0_23] : memref<8x1xf32, #tpu.memory_space<vmem>>, vector<8x1xf32>
      %51 = vector.broadcast %50 : vector<8x1xf32> to vector<8x128xf32>
      %52 = arith.subf %37, %51 : vector<8x128xf32>
      %53 = math.exp %52 : vector<8x128xf32>
      %54 = vector.broadcast %49 : vector<8x1xf32> to vector<8x128xf32>
      %55 = arith.mulf %53, %54 : vector<8x128xf32>
      %c0_24 = arith.constant 0 : index
      %c0_25 = arith.constant 0 : index
      %56 = vector.load %arg7[%c0_24, %c0_25] : memref<8x128xf32, #tpu.memory_space<vmem>>, vector<8x128xf32>
      tpu.vector_store %arg7[%c0_24, %c0_25], %55 {strides = array<i32>} : memref<8x128xf32, #tpu.memory_space<vmem>>, vector<8x128xf32>,
    } else {
    }
    return
  }
  func.func @transform_0(%arg0: i32, %arg1: i32, %arg2: i32) -> (i32, i32) {
    %c0_i32 = arith.constant 0 : i32
    %c0_i32_0 = arith.constant 0 : i32
    return %arg0, %c0_i32 : i32, i32
  }
  func.func @transform_1(%arg0: i32, %arg1: i32, %arg2: i32) -> (i32, i32) {
    %c0_i32 = arith.constant 0 : i32
    %c0_i32_0 = arith.constant 0 : i32
    return %arg0, %c0_i32 : i32, i32
  }
  func.func @transform_2(%arg0: i32, %arg1: i32, %arg2: i32) -> (i32, i32) {
    %c0_i32 = arith.constant 0 : i32
    %c0_i32_0 = arith.constant 0 : i32
    return %arg2, %c0_i32 : i32, i32
  }
  func.func @transform_3(%arg0: i32, %arg1: i32, %arg2: i32) -> (i32, i32) {
    %c0_i32 = arith.constant 0 : i32
    %c0_i32_0 = arith.constant 0 : i32
    return %c0_i32, %arg2 : i32, i32
  }
  func.func @transform_4(%arg0: i32, %arg1: i32, %arg2: i32) -> (i32, i32) {
    %0 = arith.muli %arg1, %arg2 : i32
    %c0_i32 = arith.constant 0 : i32
    return %arg0, %0 : i32, i32
  }
}

</mosaic_0001>

<llo_original>
// kernel: tpu_custom_call.1
$region0: #{tpu_custom_call.1}
  #allocation0 [shape = 'u32[]', space=smem, size = 0x4, offset = 0x4, fixed_abs, tag = 'smem constant byte address 0x4 - core index']
  #allocation1 [shape = 'u32[72,128]{1,0:T(1,128)}', space=vmem, size = 0x9000, scoped, tag = 'internal scratch']
  #allocation2 [shape = 'f32[8,128]{1,0:T(8,128)}', space=vmem, size = 0x1000, scoped, tag = 'scratch operand']
  #allocation3 [shape = 'f32[8,1]{1,0:T(8,128)}', space=vmem, size = 0x1000, scoped, tag = 'scratch operand']
  #allocation4 [shape = 'f32[8,1]{1,0:T(8,128)}', space=vmem, size = 0x1000, scoped, tag = 'scratch operand']
  %s0 = inlined_call_operand.vmem [shape: s32[8,1], index: 0, kind: input, shape index: {}]
  %s1 = inlined_call_operand.vmem [shape: f32[8,128], index: 1, kind: input, shape index: {}]
  %s2 = inlined_call_operand.hbm [shape: f32[128,128], index: 2, kind: input, shape index: {}]
  %s3 = inlined_call_operand.vmem [shape: f32[1,128], index: 3, kind: input, shape index: {}]
  %s4 = inlined_call_operand.hbm [shape: f32[8,128], index: 4, kind: output, shape index: {}]
  %s5 = sld [smem:[#allocation0]]
  $region65: #{tpu_custom_call.1} parent=0
    _
  %s7 = ssub.s32 1, %s5
  %s8 = scalar_select 0, %s7, %s5
  $region1: #{tpu_custom_call.1} parent=0
    #allocation5 [shape = 'u8[65536]{0}', space=vmem, size = 0x10000, scoped, tag = 'input window, operand 2, single buffered']
    #allocation6 [shape = 's32[2]{0}', space=sflag, size = 0x8, scoped, tag = 'scoped memory for tpu_custom_call.1']
    #allocation7 [shape = 's32[2]{0}', space=sflag, size = 0x8, scoped, tag = 'scoped memory for tpu_custom_call.1']
    #allocation8 [shape = 'u8[8192]{0}', space=vmem, size = 0x2000, scoped, tag = 'output window, operand 0']
    %9 = vsyncpa [#allocation6], 0
    %10 = vsyncpa [#allocation7], 0
    %s11 = scalar_lea.sflag [#allocation7], 1
    %12 = vsyncpa %s11, 0
    loop: start=0, step=1, limit=4
    $region2: #{tpu_custom_call.1} parent=1 // loop_pre_header
      _
    $region3: #{tpu_custom_call.1} parent=1 // loop_header
      %s14 = sphi 0, %s18
      %p15 = scmp.ge.s32.totalorder %s14, 4
      %s21 = sphi 0, %s40
      %s22 = sphi 0, %s36
      %s23 = sphi 0, %s32
      %s24 = sphi 0, %s21
      %s25 = sphi 0, %s22
      %s26 = sphi 0, %s23
      %s27 = sphi 0, %s24
      %s28 = sphi 0, %s25
      %s29 = sphi 0, %s26
      %s43 = sphi 0, %s45
      %s46 = sphi 0, %s43
      %s47 = sphi 0, %s46
      %s63 = sphi 0, %s47
      %s69 = sphi 0, %s71
      %s72 = sphi 0, %s69
      %s73 = sphi 0, %s72
      %s89 = sphi 0, %s73
      %s95 = sphi 0, %s97
      %s98 = sphi 0, %s95
      %s99 = sphi 0, %s98
      %s115 = sphi 0, %s99
      %s121 = sphi 0, %s123
      %s124 = sphi 0, %s121
      %s125 = sphi 0, %s124
      %s141 = sphi 0, %s125
      %s151 = sphi 0, %s153
      %s154 = sphi 0, %s151
      %s155 = sphi 0, %s154
      %s171 = sphi 0, %s155
    $region4: #{tpu_custom_call.1} parent=1 // loop_header_branch
      %17 = sbr.rel (%p15) target = $region8
    $region5: #{tpu_custom_call.1} parent=1 // loop_body
      %s19 = ssub.s32 %s14, 1
      %s20 = ssub.s32 %s14, 2
      %s30 = sadd.s32 1, %s23
      %p31 = scmp.ge.s32.totalorder %s30, 1
      %s32 = scalar_select %p31, 0, %s30
      %s33 = sadd.s32 1, %s22
      %s34 = scalar_select %p31, %s33, %s22
      %p35 = scmp.ge.s32.totalorder %s34, 2
      %s36 = scalar_select %p35, 0, %s34
      %s37 = sadd.s32 1, %s21
      %s38 = scalar_select %p35, %s37, %s21
      %p39 = scmp.ge.s32.totalorder %s38, 1
      %s40 = scalar_select %p39, 0, %s38
      %s41 = ssub.s32 %s21, %s40
      %p42 = scmp.eq.s32.totalorder %s41, 0
      %s44 = sadd.s32 %s43, 1
      %s45 = scalar_select %p42, %s43, %s44
      %p48 = pneg %p42
      %p49 = scmp.eq.s32.totalorder %s14, 1
      %p50 = por %p48, %p49
      %p51 = scmp.ne.s32.totalorder %s43, %s46
      %p52 = scmp.eq.s32.totalorder %s14, 0
      %p53 = por %p51, %p52
      %p54 = scmp.ne.s32.totalorder %s43, %s46
      %p55 = scmp.eq.s32.totalorder %s19, 1
      %p56 = por %p54, %p55
      %p57 = scmp.ne.s32.totalorder %s46, %s47
      %p58 = scmp.eq.s32.totalorder %s19, 0
      %p59 = por %p57, %p58
      %p60 = scmp.ne.s32.totalorder %s46, %s47
      %p61 = scmp.eq.s32.totalorder %s20, 1
      %p62 = por %p60, %p61
      %p64 = scmp.ne.s32.totalorder %s47, %s63
      %p65 = scmp.eq.s32.totalorder %s20, 0
      %p66 = por %p64, %p65
      %s67 = ssub.s32 %s21, %s40
      %p68 = scmp.eq.s32.totalorder %s67, 0
      %s70 = sadd.s32 %s69, 1
      %s71 = scalar_select %p68, %s69, %s70
      %p74 = pneg %p68
      %p75 = scmp.eq.s32.totalorder %s14, 1
      %p76 = por %p74, %p75
      %p77 = scmp.ne.s32.totalorder %s69, %s72
      %p78 = scmp.eq.s32.totalorder %s14, 0
      %p79 = por %p77, %p78
      %p80 = scmp.ne.s32.totalorder %s69, %s72
      %p81 = scmp.eq.s32.totalorder %s19, 1
      %p82 = por %p80, %p81
      %p83 = scmp.ne.s32.totalorder %s72, %s73
      %p84 = scmp.eq.s32.totalorder %s19, 0
      %p85 = por %p83, %p84
      %p86 = scmp.ne.s32.totalorder %s72, %s73
      %p87 = scmp.eq.s32.totalorder %s20, 1
      %p88 = por %p86, %p87
      %p90 = scmp.ne.s32.totalorder %s73, %s89
      %p91 = scmp.eq.s32.totalorder %s20, 0
      %p92 = por %p90, %p91
      %s93 = ssub.s32 %s23, %s32
      %p94 = scmp.eq.s32.totalorder %s93, 0
      %s96 = sadd.s32 %s95, 1
      %s97 = scalar_select %p94, %s95, %s96
      %p100 = pneg %p94
      %p101 = scmp.eq.s32.totalorder %s14, 1
      %p102 = por %p100, %p101
      %p103 = scmp.ne.s32.totalorder %s95, %s98
      %p104 = scmp.eq.s32.totalorder %s14, 0
      %p105 = por %p103, %p104
      %p106 = scmp.ne.s32.totalorder %s95, %s98
      %p107 = scmp.eq.s32.totalorder %s19, 1
      %p108 = por %p106, %p107
      %p109 = scmp.ne.s32.totalorder %s98, %s99
      %p110 = scmp.eq.s32.totalorder %s19, 0
      %p111 = por %p109, %p110
      %p112 = scmp.ne.s32.totalorder %s98, %s99
      %p113 = scmp.eq.s32.totalorder %s20, 1
      %p114 = por %p112, %p113
      %p116 = scmp.ne.s32.totalorder %s99, %s115
      %p117 = scmp.eq.s32.totalorder %s20, 0
      %p118 = por %p116, %p117
      %s119 = ssub.s32 %s23, %s32
      %p120 = scmp.eq.s32.totalorder %s119, 0
      %s122 = sadd.s32 %s121, 1
      %s123 = scalar_select %p120, %s121, %s122
      %p126 = pneg %p120
      %p127 = scmp.eq.s32.totalorder %s14, 1
      %p128 = por %p126, %p127
      %p129 = scmp.ne.s32.totalorder %s121, %s124
      %p130 = scmp.eq.s32.totalorder %s14, 0
      %p131 = por %p129, %p130
      %p132 = scmp.ne.s32.totalorder %s121, %s124
      %p133 = scmp.eq.s32.totalorder %s19, 1
      %p134 = por %p132, %p133
      %p135 = scmp.ne.s32.totalorder %s124, %s125
      %p136 = scmp.eq.s32.totalorder %s19, 0
      %p137 = por %p135, %p136
      %p138 = scmp.ne.s32.totalorder %s124, %s125
      %p139 = scmp.eq.s32.totalorder %s20, 1
      %p140 = por %p138, %p139
      %p142 = scmp.ne.s32.totalorder %s125, %s141
      %p143 = scmp.eq.s32.totalorder %s20, 0
      %p144 = por %p142, %p143
      %s145 = smul.u32 %s22, %s23
      %s146 = smul.u32 %s36, %s32
      %s147 = ssub.s32 %s21, %s40
      %s148 = ssub.s32 %s145, %s146
      %s149 = sor.u32 %s147, %s148
      %p150 = scmp.eq.s32.totalorder %s149, 0
      %s152 = sadd.s32 %s151, 1
      %s153 = scalar_select %p150, %s151, %s152
      %p156 = pneg %p150
      %p157 = scmp.eq.s32.totalorder %s14, 1
      %p158 = por %p156, %p157
      %p159 = scmp.ne.s32.totalorder %s151, %s154
      %p160 = scmp.eq.s32.totalorder %s14, 0
      %p161 = por %p159, %p160
      %p162 = scmp.ne.s32.totalorder %s151, %s154
      %p163 = scmp.eq.s32.totalorder %s19, 1
      %p164 = por %p162, %p163
      %p165 = scmp.ne.s32.totalorder %s154, %s155
      %p166 = scmp.eq.s32.totalorder %s19, 0
      %p167 = por %p165, %p166
      %p168 = scmp.ne.s32.totalorder %s154, %s155
      %p169 = scmp.eq.s32.totalorder %s20, 1
      %p170 = por %p168, %p169
      %p172 = scmp.ne.s32.totalorder %s155, %s171
      %p173 = scmp.eq.s32.totalorder %s20, 0
      %p174 = por %p172, %p173
      %p175 = scmp.le.s32.totalorder 1, %s14
      %p176 = scmp.lt.s32.totalorder %s14, 3
      %p177 = pnand %p175, %p176
      %p178 = pneg %p177
      // Predicated region
      $region9: #{tpu_custom_call.1} parent=5 // pred_check
        _
      $region10: #{tpu_custom_call.1} parent=5 // pred_check_branch
        %180 = sbr.rel (%p177) target = $region12
      $region11: #{tpu_custom_call.1} parent=5 // pred_region
        %s181 = ssub.s32 %s14, 1
        // Predicated region
        $region13: #{tpu_custom_call.1} parent=11 // pred_check
          %p182 = pneg %p59
        $region14: #{tpu_custom_call.1} parent=11 // pred_check_branch
          %184 = sbr.rel (%p182) target = $region16
        $region15: #{tpu_custom_call.1} parent=11 // pred_region
          %p185 = scmp.lt.s32.totalorder %s24, 0
          %s186 = scalar_select %p185, %s24, 0
          %s187 = smul.addr %s186, 8
          %s188 = scalar_lea.vmem %s0, %s187
        $region16: #{tpu_custom_call.1} parent=11 // pred_fallthru
          _
        // Predicated region
        $region17: #{tpu_custom_call.1} parent=11 // pred_check
          %p189 = pneg %p85
        $region18: #{tpu_custom_call.1} parent=11 // pred_check_branch
          %191 = sbr.rel (%p189) target = $region20
        $region19: #{tpu_custom_call.1} parent=11 // pred_region
          %p192 = scmp.lt.s32.totalorder %s24, 0
          %s193 = scalar_select %p192, %s24, 0
          %s194 = smul.addr %s193, 8
          %s195 = scalar_lea.vmem %s1, %s194
        $region20: #{tpu_custom_call.1} parent=11 // pred_fallthru
          _
        // Predicated region
        $region21: #{tpu_custom_call.1} parent=11 // pred_check
          %p196 = pneg %p111
        $region22: #{tpu_custom_call.1} parent=11 // pred_check_branch
          %198 = sbr.rel (%p196) target = $region24
        $region23: #{tpu_custom_call.1} parent=11 // pred_region
          %s199 = smul.u32 16, %s26
          %201 = vsyncadd [#allocation6], 0
          %s202 = smul.addr %s199, 8
          %s203 = scalar_lea.hbm %s2, %s202
          %s204 = sshll.u32 %s203, 4
          %s205 = int_to_ptr.hbm [resolvable:$true] %s204
          %s206 = sshll.u32 [#allocation5], 4
          %s207 = int_to_ptr.vmem [resolvable:$true] %s206
          %212 = dma.hbm_to_vmem [thread:$0]  %s205, 2048, %s207, [#allocation6], 128, 128, 8
        $region24: #{tpu_custom_call.1} parent=11 // pred_fallthru
          _
        // Predicated region
        $region25: #{tpu_custom_call.1} parent=11 // pred_check
          %p213 = pneg %p137
        $region26: #{tpu_custom_call.1} parent=11 // pred_check_branch
          %215 = sbr.rel (%p213) target = $region28
        $region27: #{tpu_custom_call.1} parent=11 // pred_region
          %p216 = scmp.lt.s32.totalorder %s26, 0
          %s217 = scalar_select %p216, %s26, 0
          %s218 = scalar_lea.vmem %s3, %s217
        $region28: #{tpu_custom_call.1} parent=11 // pred_fallthru
          _
      $region12: #{tpu_custom_call.1} parent=5 // pred_fallthru
        _
      %p219 = scmp.lt.s32.totalorder %s14, 2
      // Predicated region
      $region29: #{tpu_custom_call.1} parent=5 // pred_check
        %p220 = pneg %p219
      $region30: #{tpu_custom_call.1} parent=5 // pred_check_branch
        %222 = sbr.rel (%p220) target = $region32
      $region31: #{tpu_custom_call.1} parent=5 // pred_region
        _
      $region32: #{tpu_custom_call.1} parent=5 // pred_fallthru
        _
      %p223 = scmp.le.s32.totalorder 1, %s14
      %p224 = scmp.lt.s32.totalorder %s14, 3
      %p225 = pnand %p223, %p224
      %p226 = pneg %p225
      // Predicated region
      $region33: #{tpu_custom_call.1} parent=5 // pred_check
        _
      $region34: #{tpu_custom_call.1} parent=5 // pred_check_branch
        %228 = sbr.rel (%p225) target = $region36
      $region35: #{tpu_custom_call.1} parent=5 // pred_region
        %s229 = ssub.s32 %s14, 1
        // Predicated region
        $region37: #{tpu_custom_call.1} parent=35 // pred_check
          %p230 = pneg %p111
        $region38: #{tpu_custom_call.1} parent=35 // pred_check_branch
          %232 = sbr.rel (%p230) target = $region40
        $region39: #{tpu_custom_call.1} parent=35 // pred_region
          %234 = dma.done [#allocation6], 2048
        $region40: #{tpu_custom_call.1} parent=35 // pred_fallthru
          _
        %p235 = scmp.lt.s32.totalorder %s24, 0
        %s236 = scalar_select %p235, %s24, 0
        %s237 = smul.addr %s236, 8
        %s238 = scalar_lea.vmem %s0, %s237
        %p239 = pneg %p59
        %p240 = pneg %p56
        %p241 = scmp.lt.s32.totalorder %s24, 0
        %s242 = scalar_select %p241, %s24, 0
        %s243 = smul.addr %s242, 8
        %s244 = scalar_lea.vmem %s1, %s243
        %p245 = pneg %p85
        %p246 = pneg %p82
        %p247 = pneg %p111
        %p248 = pneg %p108
        %p249 = scmp.lt.s32.totalorder %s26, 0
        %s250 = scalar_select %p249, %s26, 0
        %s251 = scalar_lea.vmem %s3, %s250
        %p252 = pneg %p137
        %p253 = pneg %p134
        %p254 = pneg %p167
        %p255 = pneg %p164
        %s256 = sand.u32 %s154, 1
        %s257 = scalar_lea.sflag [#allocation7], %s256
        %s258 = sand.u32 %s154, 1
        %s259 = smul.addr %s258, 8
        %s260 = scalar_lea.vmem [#allocation8], %s259
        %p261 = scmp.lt.s32.totalorder %s24, 0
        %s262 = scalar_select %p261, %s24, 0
        %s263 = smul.addr %s262, 8
        %s264 = scalar_lea.vmem %s0, %s263
        %p265 = scmp.lt.s32.totalorder %s24, 0
        %s266 = scalar_select %p265, %s24, 0
        %s267 = smul.addr %s266, 8
        %s268 = scalar_lea.vmem %s1, %s267
        %s269 = smul.u32 16, %s26
        %p270 = scmp.lt.s32.totalorder %s26, 0
        %s271 = scalar_select %p270, %s26, 0
        %s272 = scalar_lea.vmem %s3, %s271
        %s273 = smul.u32 %s25, %s26
        %p274 = scmp.eq.s32.totalorder %s25, 0
        %p275 = scmp.eq.s32.totalorder %s26, 0
        %p276 = pnand %p274, %p275
        %p277 = pneg %p276
        // Predicated region
        $region41: #{tpu_custom_call.1} parent=35 // pred_check
          _
        $region42: #{tpu_custom_call.1} parent=35 // pred_check_branch
          %279 = sbr.rel (%p276) target = $region44
        $region43: #{tpu_custom_call.1} parent=35 // pred_region
          %v280 = vld [vmem:[%s268] sm:$0xff]
          %v281 = vmul.f32 %v280, %v280
          %282 = vadd.xlane.f32.xlu0 %v281
          %v283 = vpop.xlane.xlu0 %282
          %v284 = vmax.f32 %v283, 1e-24
          %v285 = vrsqrt.pop %v284
          %v286 = vmul.f32 %v285, %v284
          %v287 = vmul.f32 %v286, %v285
          %v288 = vmul.f32 0.5, %v287
          %v289 = vsub.f32 1.5, %v288
          %v290 = vmul.f32 %v285, %v289
          %vm291 = vweird.f32 %v284
          %vm292 = vweird.f32 %v285
          %vm293 = vmor %vm291, %vm292
          %v294 = vsel %vm293, %v285, %v290
          %v295 = vmul.f32 %v280, %v294
          %296 = vst [vmem:[#allocation2] sm:$0xff] %v295
          %vm297 = vcmask 7168
          %298 = vst.msk [vmem:[#allocation3] sm:$0xff] %vm297, -2.3819763e+38
          %299 = vst.msk [vmem:[#allocation4] sm:$0xff] %vm297, 0.0
        $region44: #{tpu_custom_call.1} parent=35 // pred_fallthru
          _
        %v300 = vld [vmem:[#allocation2] sm:$0xff]
        %v301 = vld [vmem:[#allocation5] sm:$0xff]
        %v302 = vld [vmem:[#allocation5 + $0x8] sm:$0xff]
        %v303 = vld [vmem:[#allocation5 + $0x10] sm:$0xff]
        %v304 = vld [vmem:[#allocation5 + $0x18] sm:$0xff]
        %v305 = vld [vmem:[#allocation5 + $0x20] sm:$0xff]
        %v306 = vld [vmem:[#allocation5 + $0x28] sm:$0xff]
        %v307 = vld [vmem:[#allocation5 + $0x30] sm:$0xff]
        %v308 = vld [vmem:[#allocation5 + $0x38] sm:$0xff]
        %v309 = vld [vmem:[#allocation5 + $0x40] sm:$0xff]
        %v310 = vld [vmem:[#allocation5 + $0x48] sm:$0xff]
        %v311 = vld [vmem:[#allocation5 + $0x50] sm:$0xff]
        %v312 = vld [vmem:[#allocation5 + $0x58] sm:$0xff]
        %v313 = vld [vmem:[#allocation5 + $0x60] sm:$0xff]
        %v314 = vld [vmem:[#allocation5 + $0x68] sm:$0xff]
        %v315 = vld [vmem:[#allocation5 + $0x70] sm:$0xff]
        %v316 = vld [vmem:[#allocation5 + $0x78] sm:$0xff]
        %317 = vmatpush.xpose.msra.mxu0 %v316
        %318 = vmatpush.xpose.msra.mxu0 %v315
        %319 = vmatpush.xpose.msra.mxu0 %v314
        %320 = vmatpush.xpose.msra.mxu0 %v313
        %321 = vmatpush.xpose.msra.mxu0 %v312
        %322 = vmatpush.xpose.msra.mxu0 %v311
        %323 = vmatpush.xpose.msra.mxu0 %v310
        %324 = vmatpush.xpose.msra.mxu0 %v309
        %325 = vmatpush.xpose.msra.mxu0 %v308
        %326 = vmatpush.xpose.msra.mxu0 %v307
        %327 = vmatpush.xpose.msra.mxu0 %v306
        %328 = vmatpush.xpose.msra.mxu0 %v305
        %329 = vmatpush.xpose.msra.mxu0 %v304
        %330 = vmatpush.xpose.msra.mxu0 %v303
        %331 = vmatpush.xpose.msra.mxu0 %v302
        %332 = vmatpush.xpose.msra.mxu0 %v301
        %333 = vmatmul.f32.gmra.mxu0 %v300
        %v334 = vpop.f32.mrf.mxu0
        %v335 = vadd.f32 0.0, %v334
        %336 = vdwg.mxu0
        %v337 = vld [vmem:[%s272] sm:$0x1]
        %v339 = vperm.slane %v337, 0
        %v341 = vmul.f32 %v335, %v339
        %v342 = vlaneseq
        %v343 = vand.u32 %v342, 127
        %s344 = smul.u32 %s26, 128
        %v345 = vstv %s344
        %v346 = vadd.s32 %v343, %v345
        %v347 = vld [vmem:[%s264] sm:$0xff]
        %348 = vset.pattern.permute.xlu0 0
        %349 = vperm.xlu0 %348, %v347
        %v350 = vpop.permute.xlu0 %349
        %vm351 = vcmp.eq.s32.totalorder %v346, %v350
        %vm352 = vcmp.lt.s32.totalorder %v346, 16
        %v353 = vsel %vm351, %v341, 0.0
        %354 = vadd.xlane.f32.xlu0 %v353
        %v355 = vpop.xlane.xlu0 %354
        %v356 = vmax.f32 %v355, -0.9999999
        %v357 = vmin.f32 %v356, 0.9999999
        %v358 = vsub.f32 %v357, %v355
        %v359 = vsel %vm351, %v358, 0.0
        %v360 = vadd.f32 %v341, %v359
        %v361 = vmul.f32 %v360, 64.0
        %v362 = vsel %vm352, %v361, -2.3819763e+38
        // Predicated region
        $region45: #{tpu_custom_call.1} parent=35 // pred_check
          %p363 = pneg %p274
        $region46: #{tpu_custom_call.1} parent=35 // pred_check_branch
          %365 = sbr.rel (%p363) target = $region48
        $region47: #{tpu_custom_call.1} parent=35 // pred_region
          %v366 = vld [vmem:[#allocation3] sm:$0xff]
          %367 = vmax.xlane.f32.xlu0 %v362
          %v368 = vpop.xlane.xlu0 %367
          %v369 = vmax.f32 %v366, %v368
          %v370 = vsub.f32 %v366, %v369
          %v371 = vmul.f32 %v370, 1.442695
          %v372 = vpow.pop %v371
          %v373 = vld [vmem:[#allocation4] sm:$0xff]
          %v374 = vmul.f32 %v372, %v373
          %376 = vset.pattern.permute.xlu0 0
          %377 = vperm.xlu0 %376, %v369
          %v378 = vpop.permute.xlu0 %377
          %v380 = vsub.f32 %v362, %v378
          %v381 = vmul.f32 %v380, 1.442695
          %v382 = vpow.pop %v381
          %383 = vadd.xlane.f32.xlu0 %v382
          %v384 = vpop.xlane.xlu0 %383
          %v385 = vadd.f32 %v374, %v384
          %vm386 = vcmask 7168
          %387 = vst.msk [vmem:[#allocation4] sm:$0xff] %vm386, %v385
          %388 = vst.msk [vmem:[#allocation3] sm:$0xff] %vm386, %v369
        $region48: #{tpu_custom_call.1} parent=35 // pred_fallthru
          _
        %p389 = scmp.eq.s32.totalorder %s25, 1
        // Predicated region
        $region49: #{tpu_custom_call.1} parent=35 // pred_check
          %p390 = pneg %p389
        $region50: #{tpu_custom_call.1} parent=35 // pred_check_branch
          %392 = sbr.rel (%p390) target = $region52
        $region51: #{tpu_custom_call.1} parent=35 // pred_region
          %v393 = vld [vmem:[#allocation4] sm:$0xff]
          %v394 = vrcp.pop %v393
          %v395 = vmul.f32 %v393, %v394
          %v396 = vsub.f32 2.0, %v395
          %v397 = vmul.f32 %v394, %v396
          %v398 = vld [vmem:[#allocation3] sm:$0xff]
          %400 = vset.pattern.permute.xlu0 0
          %401 = vperm.xlu0 %400, %v398
          %v402 = vpop.permute.xlu0 %401
          %v404 = vsub.f32 %v362, %v402
          %v405 = vmul.f32 %v404, 1.442695
          %v406 = vpow.pop %v405
          %408 = vset.pattern.permute.xlu0 0
          %409 = vperm.xlu0 %408, %v397
          %v410 = vpop.permute.xlu0 %409
          %v412 = vmul.f32 %v406, %v410
          %413 = vst [vmem:[%s260] sm:$0xff] %v412
        $region52: #{tpu_custom_call.1} parent=35 // pred_fallthru
          _
        %s414 = sand.u32 %s154, 1
        %s415 = scalar_lea.sflag [#allocation7], %s414
        %s416 = sand.u32 %s154, 1
        %s417 = smul.addr %s416, 8
        %s418 = scalar_lea.vmem [#allocation8], %s417
        // Predicated region
        $region53: #{tpu_custom_call.1} parent=35 // pred_check
          %p419 = pneg %p164
        $region54: #{tpu_custom_call.1} parent=35 // pred_check_branch
          %421 = sbr.rel (%p419) target = $region56
        $region55: #{tpu_custom_call.1} parent=35 // pred_region
          %s422 = smul.u32 %s25, %s26
          %424 = vsyncadd %s415, 0
          %s425 = sadd.s32 %s422, %s24
          %s426 = smul.addr %s425, 8
          %s427 = scalar_lea.hbm %s4, %s426
          %s429 = sshll.u32 %s418, 4
          %s430 = int_to_ptr.vmem [resolvable:$true] %s429
          %s431 = sshll.u32 %s427, 4
          %s432 = int_to_ptr.hbm [resolvable:$true] %s431
          %434 = dma.vmem_to_hbm [thread:$0]  %s430, 128, %s432, %s415
        $region56: #{tpu_custom_call.1} parent=35 // pred_fallthru
          _
      $region36: #{tpu_custom_call.1} parent=5 // pred_fallthru
        _
      %p435 = scmp.le.s32.totalorder 2, %s14
      // Predicated region
      $region57: #{tpu_custom_call.1} parent=5 // pred_check
        %p436 = pneg %p435
      $region58: #{tpu_custom_call.1} parent=5 // pred_check_branch
        %438 = sbr.rel (%p436) target = $region60
      $region59: #{tpu_custom_call.1} parent=5 // pred_region
        %s439 = ssub.s32 %s14, 2
        // Predicated region
        $region61: #{tpu_custom_call.1} parent=59 // pred_check
          %p440 = pneg %p170
        $region62: #{tpu_custom_call.1} parent=59 // pred_check_branch
          %442 = sbr.rel (%p440) target = $region64
        $region63: #{tpu_custom_call.1} parent=59 // pred_region
          %s443 = sand.u32 %s155, 1
          %s444 = scalar_lea.sflag [#allocation7], %s443
          %s445 = sand.u32 %s155, 1
          %s446 = smul.addr %s445, 8
          %s447 = scalar_lea.vmem [#allocation8], %s446
          %449 = dma.done %s444, 128
        $region64: #{tpu_custom_call.1} parent=59 // pred_fallthru
          _
      $region60: #{tpu_custom_call.1} parent=5 // pred_fallthru
        _
    $region6: #{tpu_custom_call.1} parent=1 // loop_footer
      %s18 = sadd.s32 1, %s14
    $region7: #{tpu_custom_call.1} parent=1 // loop_footer_branch
      %13 = sbr.rel target = $region3
    $region8: #{tpu_custom_call.1} parent=1 // loop_exit
      _
    %450 = vsyncpa [#allocation6], 1
    %s451 = scalar_lea.sflag [#allocation6], 1
    %452 = vsyncpa %s451, 1
    %453 = vsyncpa [#allocation7], 1
    %s454 = scalar_lea.sflag [#allocation7], 1
    %455 = vsyncpa %s454, 1

</llo_original>
